<compile_context>
chip_gen: v6e
topology: v6e:2x2x1
jax: 0.10.0
libtpu: 0.0.40
codegen_flags: <defaults>
</compile_context>

<pallas_src>
import functools

import jax
import jax.numpy as jnp
from jax.experimental import pallas as pl
from jax.experimental.pallas import tpu as pltpu

_IN = 5          # fc1 in_features
_OUT = 5         # fc1 out_features
_FPAD = 8        # feature dims padded to the sublane width
_ONES_ROW = _IN  # row of x_aug carrying the implicit 1.0 that folds in the bias


def _linear_kernel(p_ref, x_ref, o_ref):
    # p_ref: (8, 8)  augmented weight [W | b | 0]  (out-padded x in-padded)
    # x_ref: (8, TB) transposed / padded activations, batch on the lane axis
    # o_ref: (8, TB) transposed / padded outputs
    o_ref[...] = jnp.dot(
        p_ref[...], x_ref[...], preferred_element_type=jnp.float32
    ).astype(o_ref.dtype)


def pack_params(weight, bias):
    """Pack PyTorch-layout weight (out, in) and bias (out,) into one (8, 8)
    f32 buffer with the bias folded in as an extra input column."""
    p = jnp.zeros((_FPAD, _FPAD), jnp.float32)
    p = p.at[:_OUT, :_IN].set(weight.astype(jnp.float32))
    p = p.at[:_OUT, _ONES_ROW].set(bias.astype(jnp.float32))
    return p


@functools.partial(jax.jit, static_argnames=("tb",))
def single_layer_linear_forward(x, packed_params, *, tb=512):
    """x: (B, 5) float32 -> (B, 5) float32  (== fc1(x))."""
    B = x.shape[0]
    assert x.shape[1] == _IN

    # Batch tile: multiple of 128 lanes; clamp so tiny batches stay cheap.
    tb = max(128, min(int(tb), 2048))
    b_pad = pl.cdiv(B, tb) * tb

    # (features, batch) layout, feature-padded; the ones row folds in the bias.
    x_aug = jnp.zeros((_FPAD, b_pad), jnp.float32)
    x_aug = x_aug.at[:_IN, :B].set(x.T.astype(jnp.float32))
    x_aug = x_aug.at[_ONES_ROW, :].set(1.0)

    y_pad = pl.pallas_call(
        _linear_kernel,
        out_shape=jax.ShapeDtypeStruct((_FPAD, b_pad), jnp.float32),
        grid=(b_pad // tb,),
        in_specs=[
            pl.BlockSpec((_FPAD, _FPAD), lambda i: (0, 0)),  # params: resident
            pl.BlockSpec((_FPAD, tb), lambda i: (0, i)),     # x: streamed
        ],
        out_specs=pl.BlockSpec((_FPAD, tb), lambda i: (0, i)),
        compiler_params=pltpu.CompilerParams(
            dimension_semantics=("parallel",),          # 2x on v7x's dual TC
            vmem_limit_bytes=32 * 1024 * 1024,          # far above working set
        ),
    )(packed_params, x_aug)

    # Strip feature/batch padding and return PyTorch (B, out) layout.
    return y_pad[:_OUT, :B].T


def reference_forward(x, weight, bias):
    return x @ weight.T + bias


if __name__ == "__main__":
    key = jax.random.PRNGKey(0)
    kx, kw, kb = jax.random.split(key, 3)

    batch = 8
    x = jax.random.normal(kx, (batch, _IN), dtype=jnp.float32)

    # Deterministic params matching torch.nn.Linear(5, 5) init bounds.
    bound = 1.0 / jnp.sqrt(float(_IN))
    weight = jax.random.uniform(kw, (_OUT, _IN), jnp.float32, -bound, bound)
    bias = jax.random.uniform(kb, (_OUT,), jnp.float32, -bound, bound)

    packed = pack_params(weight, bias)
    out = single_layer_linear_forward(x, packed, tb=128)
    out = jax.block_until_ready(out)

    ref = reference_forward(x, weight, bias)
    assert out.shape == (batch, _OUT), out.shape
    assert jnp.allclose(out, ref, atol=1e-5, rtol=1e-5), "mismatch vs reference"

    print("KERNEL_OK")
</pallas_src>

<mosaic_0001>
module attributes {stable_mosaic.version = 11 : i64} {
  func.func @_linear_kernel(%arg0: i32, %arg1: memref<8x8xf32, #tpu.memory_space<vmem>>, %arg2: memref<8x128xf32, #tpu.memory_space<vmem>>, %arg3: memref<8x128xf32, #tpu.memory_space<vmem>>) attributes {dimension_semantics = [#tpu.dimension_semantics<parallel>], iteration_bounds = array<i64: 1>, scalar_prefetch = 0 : i64, scratch_operands = 0 : i64, tpu.core_type = #tpu.core_type<tc>, window_params = [{pipeline_mode = #tpu.pipeline_mode<synchronous>, transform_indices = @transform_0, window_bounds = array<i64: 8, 8>}, {transform_indices = @transform_1, window_bounds = array<i64: 8, 128>}, {transform_indices = @transform_2, window_bounds = array<i64: 8, 128>}]} {
    %c0 = arith.constant 0 : index
    %c0_0 = arith.constant 0 : index
    %0 = vector.load %arg1[%c0, %c0_0] : memref<8x8xf32, #tpu.memory_space<vmem>>, vector<8x8xf32>
    %c0_1 = arith.constant 0 : index
    %c0_2 = arith.constant 0 : index
    %1 = vector.load %arg2[%c0_1, %c0_2] : memref<8x128xf32, #tpu.memory_space<vmem>>, vector<8x128xf32>
    %cst = arith.constant dense<0.000000e+00> : vector<8x128xf32>
    %2 = tpu.matmul %0, %1, %cst {dimension_numbers = #tpu.dot_dimension_numbers<[1], [0], [0], [1], [0, 0, 1, 1], [], []>} : vector<8x8xf32>, vector<8x128xf32>, vector<8x128xf32> -> vector<8x128xf32>
    %c0_3 = arith.constant 0 : index
    %c0_4 = arith.constant 0 : index
    %3 = vector.load %arg3[%c0_3, %c0_4] : memref<8x128xf32, #tpu.memory_space<vmem>>, vector<8x128xf32>
    tpu.vector_store %arg3[%c0_3, %c0_4], %2 {strides = array<i32>} : memref<8x128xf32, #tpu.memory_space<vmem>>, vector<8x128xf32>,
    return
  }
  func.func @transform_0(%arg0: i32) -> (i32, i32) {
    %c0_i32 = arith.constant 0 : i32
    %c0_i32_0 = arith.constant 0 : i32
    %c0_i32_1 = arith.constant 0 : i32
    return %c0_i32, %c0_i32_0 : i32, i32
  }
  func.func @transform_1(%arg0: i32) -> (i32, i32) {
    %c0_i32 = arith.constant 0 : i32
    %c0_i32_0 = arith.constant 0 : i32
    return %c0_i32, %arg0 : i32, i32
  }
  func.func @transform_2(%arg0: i32) -> (i32, i32) {
    %c0_i32 = arith.constant 0 : i32
    %c0_i32_0 = arith.constant 0 : i32
    return %c0_i32, %arg0 : i32, i32
  }
}

</mosaic_0001>

<llo_original>
// kernel: single_layer_linear_forward.1
$region0: #{single_layer_linear_forward.1}
  #allocation0 [shape = 'u32[]', space=smem, size = 0x4, offset = 0x4, fixed_abs, tag = 'smem constant byte address 0x4 - core index']
  #allocation1 [shape = 'u32[144,128]{1,0:T(1,128)}', space=vmem, size = 0x12000, scoped, tag = 'internal scratch']
  %s0 = inlined_call_operand.vmem [shape: f32[8,8], index: 0, kind: input, shape index: {}]
  %s1 = inlined_call_operand.vmem [shape: f32[8,128], index: 1, kind: input, shape index: {}]
  %s2 = inlined_call_operand.vmem [shape: f32[8,128], index: 2, kind: output, shape index: {}]
  %s3 = sld [smem:[#allocation0]]
  $region18: #{single_layer_linear_forward.1} parent=0
    _
  %s5 = ssub.s32 1, %s3
  %s6 = scalar_select 0, %s5, %s3
  // Predicated region
  $region2: #{single_layer_linear_forward.1} parent=0 // pred_check
    _
  $region3: #{single_layer_linear_forward.1} parent=0 // pred_check_branch
    %8 = sbr.rel (0) target = $region5
  $region4: #{single_layer_linear_forward.1} parent=0 // pred_region
    _
  $region5: #{single_layer_linear_forward.1} parent=0 // pred_fallthru
    _
  // Predicated region
  $region6: #{single_layer_linear_forward.1} parent=0 // pred_check
    _
  $region7: #{single_layer_linear_forward.1} parent=0 // pred_check_branch
    %10 = sbr.rel (0) target = $region9
  $region8: #{single_layer_linear_forward.1} parent=0 // pred_region
    _
  $region9: #{single_layer_linear_forward.1} parent=0 // pred_fallthru
    _
  %v11 = vld [vmem:[%s0] sm:$0xff]
  %v12 = vld [vmem:[%s1] sm:$0xff]
  %vm13 = vcmask 64512
  %v15 = vsel %vm13, %v11, 0
  %17 = vmatprep.subr.mxu0 0.0
  %18 = vmatpush1.msra.mxu0 0.0
  %19 = vmatprep.subr.mxu0 0.0
  %20 = vmatpush1.msra.mxu0 0.0
  %21 = vmatprep.subr.mxu0 0.0
  %22 = vmatpush1.msra.mxu0 0.0
  %23 = vmatprep.subr.mxu0 0.0
  %24 = vmatpush1.msra.mxu0 0.0
  %25 = vmatprep.subr.mxu0 0.0
  %26 = vmatpush1.msra.mxu0 0.0
  %27 = vmatprep.subr.mxu0 0.0
  %28 = vmatpush1.msra.mxu0 0.0
  %29 = vmatprep.subr.mxu0 0.0
  %30 = vmatpush1.msra.mxu0 0.0
  %31 = vmatprep.subr.mxu0 0.0
  %32 = vmatpush1.msra.mxu0 0.0
  %33 = vmatprep.subr.mxu0 0.0
  %34 = vmatpush1.msra.mxu0 0.0
  %35 = vmatprep.subr.mxu0 0.0
  %36 = vmatpush1.msra.mxu0 0.0
  %37 = vmatprep.subr.mxu0 0.0
  %38 = vmatpush1.msra.mxu0 0.0
  %39 = vmatprep.subr.mxu0 0.0
  %40 = vmatpush1.msra.mxu0 0.0
  %41 = vmatprep.subr.mxu0 0.0
  %42 = vmatpush1.msra.mxu0 0.0
  %43 = vmatprep.subr.mxu0 0.0
  %44 = vmatpush1.msra.mxu0 0.0
  %45 = vmatprep.subr.mxu0 0.0
  %46 = vmatpush1.msra.mxu0 0.0
  %47 = vmatprep.subr.mxu0 0.0
  %48 = vmatpush1.msra.mxu0 %v12
  %49 = vmatprep.subr.mxu0 0.0
  %50 = vmatpush2.msra.mxu0 0.0
  %51 = vmatprep.subr.mxu0 0.0
  %52 = vmatpush2.msra.mxu0 0.0
  %53 = vmatprep.subr.mxu0 0.0
  %54 = vmatpush2.msra.mxu0 0.0
  %55 = vmatprep.subr.mxu0 0.0
  %56 = vmatpush2.msra.mxu0 0.0
  %57 = vmatprep.subr.mxu0 0.0
  %58 = vmatpush2.msra.mxu0 0.0
  %59 = vmatprep.subr.mxu0 0.0
  %60 = vmatpush2.msra.mxu0 0.0
  %61 = vmatprep.subr.mxu0 0.0
  %62 = vmatpush2.msra.mxu0 0.0
  %63 = vmatprep.subr.mxu0 0.0
  %64 = vmatpush2.msra.mxu0 0.0
  %65 = vmatprep.subr.mxu0 0.0
  %66 = vmatpush2.msra.mxu0 0.0
  %67 = vmatprep.subr.mxu0 0.0
  %68 = vmatpush2.msra.mxu0 0.0
  %69 = vmatprep.subr.mxu0 0.0
  %70 = vmatpush2.msra.mxu0 0.0
  %71 = vmatprep.subr.mxu0 0.0
  %72 = vmatpush2.msra.mxu0 0.0
  %73 = vmatprep.subr.mxu0 0.0
  %74 = vmatpush2.msra.mxu0 0.0
  %75 = vmatprep.subr.mxu0 0.0
  %76 = vmatpush2.msra.mxu0 0.0
  %77 = vmatprep.subr.mxu0 0.0
  %78 = vmatpush2.msra.mxu0 0.0
  %79 = vmatprep.subr.mxu0 0.0
  %80 = vmatpush2.msra.mxu0 0.0
  %81 = vmatprep.mubr.f32.mxu0 0.0
  %82 = vmatmul.mubr.f32.gmra.mxu0 %v15
  %v83 = vpop.f32.mrf.mxu0
  %v84 = vadd.f32 0.0, %v83
  %v85 = vpop.f32.mrf.mxu0
  %86 = vdwg.mxu0
  %87 = vst [vmem:[%s2] sm:$0xff] %v84
  // Predicated region
  $region10: #{single_layer_linear_forward.1} parent=0 // pred_check
    _
  $region11: #{single_layer_linear_forward.1} parent=0 // pred_check_branch
    %89 = sbr.rel (0) target = $region13
  $region12: #{single_layer_linear_forward.1} parent=0 // pred_region
    _
  $region13: #{single_layer_linear_forward.1} parent=0 // pred_fallthru
    _
  // Predicated region
  $region14: #{single_layer_linear_forward.1} parent=0 // pred_check
    _
  $region15: #{single_layer_linear_forward.1} parent=0 // pred_check_branch
    %91 = sbr.rel (0) target = $region17
  $region16: #{single_layer_linear_forward.1} parent=0 // pred_region
    _
  $region17: #{single_layer_linear_forward.1} parent=0 // pred_fallthru
    _

</llo_original>
